<compile_context>
chip_gen: v5e
topology: v5e:2x2
jax: 0.10.0
libtpu: 0.0.40
codegen_flags: <defaults>
</compile_context>

<pallas_src>
import jax
import jax.numpy as jnp
from jax.experimental import pallas as pl
from jax.experimental.pallas import tpu as pltpu

EPS = 1e-5


def _bn_relu_fused(h, gamma, beta, inv_b):
    # One reduction pass: sum and sum-of-squares -> mean / biased variance.
    s = jnp.sum(h, axis=0, keepdims=True)
    ss = jnp.sum(h * h, axis=0, keepdims=True)
    m = s * inv_b
    v = ss * inv_b - m * m
    # Fold BN into a single multiply-add per element.
    scale = gamma * jax.lax.rsqrt(v + EPS)
    shift = beta - m * scale
    return jnp.maximum(h * scale + shift, 0.0)


def inv_generator_kernel(x_ref, w1_ref, p256_ref, w2_ref, p128_ref, w3_ref, o_ref):
    B = x_ref.shape[0]
    inv_b = 1.0 / B  # static

    x = x_ref[...].astype(jnp.float32)

    # packed per-feature params (static row slices of lane-aligned buffers)
    b1, g1, be1 = p256_ref[0:1, :], p256_ref[1:2, :], p256_ref[2:3, :]
    b2, g2, be2, b3 = (
        p128_ref[0:1, :],
        p128_ref[1:2, :],
        p128_ref[2:3, :],
        p128_ref[3:4, :],
    )

    # fc1: Linear(input_dim, 256).  For input_dim == 1 the contraction is a
    # degenerate outer product -> do it on the VPU as a broadcast multiply.
    if x_ref.shape[1] == 1:
        h1 = x * w1_ref[0:1, :] + b1
    else:
        h1 = jnp.dot(x, w1_ref[...], preferred_element_type=jnp.float32) + b1
    h1 = _bn_relu_fused(h1, g1, be1, inv_b)

    # fc2: Linear(256, 128) + BN + ReLU  (MXU matmul, f32 accumulation)
    h2 = jnp.dot(h1, w2_ref[...], preferred_element_type=jnp.float32) + b2
    h2 = _bn_relu_fused(h2, g2, be2, inv_b)

    # fc3: Linear(128, out_pad) -- out columns zero-padded to 128 so the store
    # below is a full-lane (unmasked) store.
    out = jnp.dot(h2, w3_ref[...], preferred_element_type=jnp.float32) + b3
    o_ref[...] = out.astype(o_ref.dtype)


def inv_generator_forward(x, params):
    """x: [B, input_dim] float32. params: dict of weights (see init_params)."""
    B, _ = x.shape
    out_dim = params["w3"].shape[1]
    hidden2 = params["w2"].shape[1]          # 128
    out_pad = ((out_dim + 127) // 128) * 128  # lane-dense output width (128)
    assert out_pad == hidden2 == 128, "packing layout assumes 128-wide fc2/fc3"

    # pack the tiny per-feature parameter rows into two lane-aligned buffers
    p256 = jnp.concatenate([params["b1"], params["g1"], params["be1"]], axis=0)  # (3,256)
    b3p = jnp.pad(params["b3"], ((0, 0), (0, out_pad - out_dim)))
    p128 = jnp.concatenate(
        [params["b2"], params["g2"], params["be2"], b3p], axis=0
    )  # (4,128)
    w3p = jnp.pad(params["w3"], ((0, 0), (0, out_pad - out_dim)))  # (128,128)

    args = (x, params["w1"], p256, params["w2"], p128, w3p)
    vmem = pl.BlockSpec(memory_space=pltpu.MemorySpace.VMEM)

    out_padded = pl.pallas_call(
        inv_generator_kernel,
        out_shape=jax.ShapeDtypeStruct((B, out_pad), jnp.float32),
        in_specs=[vmem] * len(args),
        out_specs=vmem,
    )(*args)
    return out_padded[:, :out_dim]


def init_params(key, input_dim=1, output_dim=30):
    """Deterministic synthetic init matching the module's layer shapes.

    Linear weights are stored transposed ([in, out]) relative to PyTorch's
    [out, in] so the kernel can do x @ W.  Per-feature params are kept (1, F)
    so they stay lane-aligned and packable.
    """
    ks = jax.random.split(key, 3)
    scale = 0.02

    def lin(k, fan_in, fan_out):
        kw, kb = jax.random.split(k)
        w = scale * jax.random.normal(kw, (fan_in, fan_out), jnp.float32)
        b = scale * jax.random.normal(kb, (1, fan_out), jnp.float32)
        return w, b

    w1, b1 = lin(ks[0], input_dim, 256)
    w2, b2 = lin(ks[1], 256, 128)
    w3, b3 = lin(ks[2], 128, output_dim)

    g1 = jnp.ones((1, 256), jnp.float32)
    be1 = jnp.zeros((1, 256), jnp.float32)
    g2 = jnp.ones((1, 128), jnp.float32)
    be2 = jnp.zeros((1, 128), jnp.float32)

    return dict(
        w1=w1, b1=b1, g1=g1, be1=be1,
        w2=w2, b2=b2, g2=g2, be2=be2,
        w3=w3, b3=b3,
    )


if __name__ == "__main__":
    key = jax.random.PRNGKey(0)
    kx, kp = jax.random.split(key)

    B, input_dim, output_dim = 8, 1, 30
    x = jax.random.normal(kx, (B, input_dim), jnp.float32)
    params = init_params(kp, input_dim=input_dim, output_dim=output_dim)

    out = inv_generator_forward(x, params)
    jax.block_until_ready(out)

    assert out.shape == (B, output_dim), out.shape
    assert out.dtype == jnp.float32

    # pure-JAX reference of the same module math (two-pass BN, training mode)
    def ref(x, p):
        h = x @ p["w1"] + p["b1"]
        m = h.mean(0, keepdims=True)
        v = ((h - m) ** 2).mean(0, keepdims=True)
        h = jnp.maximum(p["g1"] * (h - m) / jnp.sqrt(v + EPS) + p["be1"], 0.0)
        h = h @ p["w2"] + p["b2"]
        m = h.mean(0, keepdims=True)
        v = ((h - m) ** 2).mean(0, keepdims=True)
        h = jnp.maximum(p["g2"] * (h - m) / jnp.sqrt(v + EPS) + p["be2"], 0.0)
        return h @ p["w3"] + p["b3"]

    expected = ref(x, params)
    assert jnp.allclose(out, expected, atol=2e-4, rtol=2e-4), (
        float(jnp.max(jnp.abs(out - expected)))
    )

    print("KERNEL_OK")
</pallas_src>

<mosaic_0001>
module attributes {stable_mosaic.version = 11 : i64} {
  func.func @inv_generator_kernel(%arg0: memref<8x1xf32, #tpu.memory_space<vmem>>, %arg1: memref<1x256xf32, #tpu.memory_space<vmem>>, %arg2: memref<3x256xf32, #tpu.memory_space<vmem>>, %arg3: memref<256x128xf32, #tpu.memory_space<vmem>>, %arg4: memref<4x128xf32, #tpu.memory_space<vmem>>, %arg5: memref<128x128xf32, #tpu.memory_space<vmem>>, %arg6: memref<8x128xf32, #tpu.memory_space<vmem>>) attributes {dimension_semantics = [], scalar_prefetch = 0 : i64, scratch_operands = 0 : i64, tpu.core_type = #tpu.core_type<tc>} {
    %c0 = arith.constant 0 : index
    %c0_0 = arith.constant 0 : index
    %0 = vector.load %arg0[%c0, %c0_0] : memref<8x1xf32, #tpu.memory_space<vmem>>, vector<8x1xf32>
    %c0_1 = arith.constant 0 : index
    %c0_2 = arith.constant 0 : index
    %1 = vector.load %arg2[%c0_1, %c0_2] : memref<3x256xf32, #tpu.memory_space<vmem>>, vector<1x256xf32>
    %c1 = arith.constant 1 : index
    %c0_3 = arith.constant 0 : index
    %2 = vector.load %arg2[%c1, %c0_3] : memref<3x256xf32, #tpu.memory_space<vmem>>, vector<1x256xf32>
    %c2 = arith.constant 2 : index
    %c0_4 = arith.constant 0 : index
    %3 = vector.load %arg2[%c2, %c0_4] : memref<3x256xf32, #tpu.memory_space<vmem>>, vector<1x256xf32>
    %c0_5 = arith.constant 0 : index
    %c0_6 = arith.constant 0 : index
    %4 = vector.load %arg4[%c0_5, %c0_6] : memref<4x128xf32, #tpu.memory_space<vmem>>, vector<1x128xf32>
    %c1_7 = arith.constant 1 : index
    %c0_8 = arith.constant 0 : index
    %5 = vector.load %arg4[%c1_7, %c0_8] : memref<4x128xf32, #tpu.memory_space<vmem>>, vector<1x128xf32>
    %c2_9 = arith.constant 2 : index
    %c0_10 = arith.constant 0 : index
    %6 = vector.load %arg4[%c2_9, %c0_10] : memref<4x128xf32, #tpu.memory_space<vmem>>, vector<1x128xf32>
    %c3 = arith.constant 3 : index
    %c0_11 = arith.constant 0 : index
    %7 = vector.load %arg4[%c3, %c0_11] : memref<4x128xf32, #tpu.memory_space<vmem>>, vector<1x128xf32>
    %c0_12 = arith.constant 0 : index
    %c0_13 = arith.constant 0 : index
    %8 = vector.load %arg1[%c0_12, %c0_13] : memref<1x256xf32, #tpu.memory_space<vmem>>, vector<1x256xf32>
    %9 = vector.broadcast %0 : vector<8x1xf32> to vector<8x256xf32>
    %10 = vector.broadcast %8 : vector<1x256xf32> to vector<8x256xf32>
    %11 = arith.mulf %9, %10 : vector<8x256xf32>
    %12 = vector.broadcast %1 : vector<1x256xf32> to vector<8x256xf32>
    %13 = arith.addf %11, %12 : vector<8x256xf32>
    %cst = arith.constant dense<0.000000e+00> : vector<256xf32>
    %14 = vector.multi_reduction <add>, %13, %cst [0] : vector<8x256xf32> to vector<256xf32>
    %15 = vector.shape_cast %14 : vector<256xf32> to vector<1x256xf32>
    %16 = arith.mulf %13, %13 : vector<8x256xf32>
    %cst_14 = arith.constant dense<0.000000e+00> : vector<256xf32>
    %17 = vector.multi_reduction <add>, %16, %cst_14 [0] : vector<8x256xf32> to vector<256xf32>
    %18 = vector.shape_cast %17 : vector<256xf32> to vector<1x256xf32>
    %cst_15 = arith.constant 1.250000e-01 : f32
    %19 = vector.broadcast %cst_15 : f32 to vector<1x256xf32>
    %20 = arith.mulf %15, %19 : vector<1x256xf32>
    %cst_16 = arith.constant 1.250000e-01 : f32
    %21 = vector.broadcast %cst_16 : f32 to vector<1x256xf32>
    %22 = arith.mulf %18, %21 : vector<1x256xf32>
    %23 = arith.mulf %20, %20 : vector<1x256xf32>
    %24 = arith.subf %22, %23 : vector<1x256xf32>
    %cst_17 = arith.constant 9.99999974E-6 : f32
    %25 = vector.broadcast %cst_17 : f32 to vector<1x256xf32>
    %26 = arith.addf %24, %25 : vector<1x256xf32>
    %27 = math.rsqrt %26 : vector<1x256xf32>
    %28 = arith.mulf %2, %27 : vector<1x256xf32>
    %29 = arith.mulf %20, %28 : vector<1x256xf32>
    %30 = arith.subf %3, %29 : vector<1x256xf32>
    %31 = vector.broadcast %28 : vector<1x256xf32> to vector<8x256xf32>
    %32 = arith.mulf %13, %31 : vector<8x256xf32>
    %33 = vector.broadcast %30 : vector<1x256xf32> to vector<8x256xf32>
    %34 = arith.addf %32, %33 : vector<8x256xf32>
    %cst_18 = arith.constant 0.000000e+00 : f32
    %35 = vector.broadcast %cst_18 : f32 to vector<8x256xf32>
    %36 = arith.maximumf %34, %35 : vector<8x256xf32>
    %c0_19 = arith.constant 0 : index
    %c0_20 = arith.constant 0 : index
    %37 = vector.load %arg3[%c0_19, %c0_20] : memref<256x128xf32, #tpu.memory_space<vmem>>, vector<256x128xf32>
    %cst_21 = arith.constant dense<0.000000e+00> : vector<8x128xf32>
    %38 = tpu.matmul %36, %37, %cst_21 {dimension_numbers = #tpu.dot_dimension_numbers<[1], [0], [0], [1], [0, 0, 1, 1], [], []>} : vector<8x256xf32>, vector<256x128xf32>, vector<8x128xf32> -> vector<8x128xf32>
    %39 = vector.broadcast %4 : vector<1x128xf32> to vector<8x128xf32>
    %40 = arith.addf %38, %39 : vector<8x128xf32>
    %cst_22 = arith.constant dense<0.000000e+00> : vector<128xf32>
    %41 = vector.multi_reduction <add>, %40, %cst_22 [0] : vector<8x128xf32> to vector<128xf32>
    %42 = vector.shape_cast %41 : vector<128xf32> to vector<1x128xf32>
    %43 = arith.mulf %40, %40 : vector<8x128xf32>
    %cst_23 = arith.constant dense<0.000000e+00> : vector<128xf32>
    %44 = vector.multi_reduction <add>, %43, %cst_23 [0] : vector<8x128xf32> to vector<128xf32>
    %45 = vector.shape_cast %44 : vector<128xf32> to vector<1x128xf32>
    %cst_24 = arith.constant 1.250000e-01 : f32
    %46 = vector.broadcast %cst_24 : f32 to vector<1x128xf32>
    %47 = arith.mulf %42, %46 : vector<1x128xf32>
    %cst_25 = arith.constant 1.250000e-01 : f32
    %48 = vector.broadcast %cst_25 : f32 to vector<1x128xf32>
    %49 = arith.mulf %45, %48 : vector<1x128xf32>
    %50 = arith.mulf %47, %47 : vector<1x128xf32>
    %51 = arith.subf %49, %50 : vector<1x128xf32>
    %cst_26 = arith.constant 9.99999974E-6 : f32
    %52 = vector.broadcast %cst_26 : f32 to vector<1x128xf32>
    %53 = arith.addf %51, %52 : vector<1x128xf32>
    %54 = math.rsqrt %53 : vector<1x128xf32>
    %55 = arith.mulf %5, %54 : vector<1x128xf32>
    %56 = arith.mulf %47, %55 : vector<1x128xf32>
    %57 = arith.subf %6, %56 : vector<1x128xf32>
    %58 = vector.broadcast %55 : vector<1x128xf32> to vector<8x128xf32>
    %59 = arith.mulf %40, %58 : vector<8x128xf32>
    %60 = vector.broadcast %57 : vector<1x128xf32> to vector<8x128xf32>
    %61 = arith.addf %59, %60 : vector<8x128xf32>
    %cst_27 = arith.constant 0.000000e+00 : f32
    %62 = vector.broadcast %cst_27 : f32 to vector<8x128xf32>
    %63 = arith.maximumf %61, %62 : vector<8x128xf32>
    %c0_28 = arith.constant 0 : index
    %c0_29 = arith.constant 0 : index
    %64 = vector.load %arg5[%c0_28, %c0_29] : memref<128x128xf32, #tpu.memory_space<vmem>>, vector<128x128xf32>
    %cst_30 = arith.constant dense<0.000000e+00> : vector<8x128xf32>
    %65 = tpu.matmul %63, %64, %cst_30 {dimension_numbers = #tpu.dot_dimension_numbers<[1], [0], [0], [1], [0, 0, 1, 1], [], []>} : vector<8x128xf32>, vector<128x128xf32>, vector<8x128xf32> -> vector<8x128xf32>
    %66 = vector.broadcast %7 : vector<1x128xf32> to vector<8x128xf32>
    %67 = arith.addf %65, %66 : vector<8x128xf32>
    %c0_31 = arith.constant 0 : index
    %c0_32 = arith.constant 0 : index
    %68 = vector.load %arg6[%c0_31, %c0_32] : memref<8x128xf32, #tpu.memory_space<vmem>>, vector<8x128xf32>
    tpu.vector_store %arg6[%c0_31, %c0_32], %67 {strides = array<i32>} : memref<8x128xf32, #tpu.memory_space<vmem>>, vector<8x128xf32>,
    return
  }
}

</mosaic_0001>

<llo_original>
// kernel: tpu_custom_call.1
$region0: #{tpu_custom_call.1}
  #allocation0 [shape = 'u32[]', space=smem, size = 0x4, offset = 0x4, fixed_abs, tag = 'smem constant byte address 0x4 - core index']
  #allocation1 [shape = 'u32[72,128]{1,0:T(1,128)}', space=vmem, size = 0x9000, scoped, tag = 'internal scratch']
  %s0 = inlined_call_operand.vmem [shape: f32[8,1], index: 0, kind: input, shape index: {}]
  %s1 = inlined_call_operand.hbm [shape: f32[1,256], index: 1, kind: input, shape index: {}]
  %s2 = inlined_call_operand.vmem [shape: f32[3,256], index: 2, kind: input, shape index: {}]
  %s3 = inlined_call_operand.hbm [shape: f32[256,128], index: 3, kind: input, shape index: {}]
  %s4 = inlined_call_operand.vmem [shape: f32[4,128], index: 4, kind: input, shape index: {}]
  %s5 = inlined_call_operand.hbm [shape: f32[128,128], index: 5, kind: input, shape index: {}]
  %s6 = inlined_call_operand.hbm [shape: f32[8,128], index: 6, kind: output, shape index: {}]
  %s7 = sld [smem:[#allocation0]]
  $region46: #{tpu_custom_call.1} parent=0
    _
  %s9 = ssub.s32 1, %s7
  %s10 = scalar_select 0, %s9, %s7
  $region1: #{tpu_custom_call.1} parent=0
    #allocation2 [shape = 'u8[1024]{0}', space=vmem, size = 0x400, scoped, tag = 'input window, operand 1, single buffered']
    #allocation3 [shape = 's32[1]{0}', space=sflag, size = 0x4, scoped, tag = 'scoped memory for tpu_custom_call.1']
    #allocation4 [shape = 's32[1]{0}', space=sflag, size = 0x4, scoped, tag = 'scoped memory for tpu_custom_call.1']
    #allocation5 [shape = 'u8[131072]{0}', space=vmem, size = 0x20000, scoped, tag = 'input window, operand 3, single buffered']
    #allocation6 [shape = 's32[1]{0}', space=sflag, size = 0x4, scoped, tag = 'scoped memory for tpu_custom_call.1']
    #allocation7 [shape = 'u8[65536]{0}', space=vmem, size = 0x10000, scoped, tag = 'input window, operand 5, single buffered']
    #allocation8 [shape = 'u8[4096]{0}', space=vmem, size = 0x1000, scoped, tag = 'output window, operand 0, single buffered']
    %11 = vsyncpa [#allocation3], 0
    %12 = vsyncpa [#allocation6], 0
    %13 = vsyncpa [#allocation4], 0
    // Predicated region
    $region2: #{tpu_custom_call.1} parent=1 // pred_check
      _
    $region3: #{tpu_custom_call.1} parent=1 // pred_check_branch
      %15 = sbr.rel (0) target = $region5
    $region4: #{tpu_custom_call.1} parent=1 // pred_region
      _
    $region5: #{tpu_custom_call.1} parent=1 // pred_fallthru
      _
    // Predicated region
    $region6: #{tpu_custom_call.1} parent=1 // pred_check
      _
    $region7: #{tpu_custom_call.1} parent=1 // pred_check_branch
      %17 = sbr.rel (0) target = $region9
    $region8: #{tpu_custom_call.1} parent=1 // pred_region
      %19 = vsyncadd [#allocation3], 0
      %s21 = sshll.u32 %s1, 4
      %s22 = int_to_ptr.hbm [resolvable:$true] %s21
      %s23 = sshll.u32 [#allocation2], 4
      %s24 = int_to_ptr.vmem [resolvable:$true] %s23
      %26 = dma.hbm_to_vmem [thread:$0]  %s22, 32, %s24, [#allocation3]
    $region9: #{tpu_custom_call.1} parent=1 // pred_fallthru
      _
    // Predicated region
    $region10: #{tpu_custom_call.1} parent=1 // pred_check
      _
    $region11: #{tpu_custom_call.1} parent=1 // pred_check_branch
      %28 = sbr.rel (0) target = $region13
    $region12: #{tpu_custom_call.1} parent=1 // pred_region
      _
    $region13: #{tpu_custom_call.1} parent=1 // pred_fallthru
      _
    // Predicated region
    $region14: #{tpu_custom_call.1} parent=1 // pred_check
      _
    $region15: #{tpu_custom_call.1} parent=1 // pred_check_branch
      %30 = sbr.rel (0) target = $region17
    $region16: #{tpu_custom_call.1} parent=1 // pred_region
      %32 = vsyncadd [#allocation6], 0
      %s33 = sshll.u32 %s3, 4
      %s34 = int_to_ptr.hbm [resolvable:$true] %s33
      %s35 = sshll.u32 [#allocation5], 4
      %s36 = int_to_ptr.vmem [resolvable:$true] %s35
      %41 = dma.hbm_to_vmem [thread:$0]  %s34, 4096, %s36, [#allocation6], 128, 128, 8
    $region17: #{tpu_custom_call.1} parent=1 // pred_fallthru
      _
    // Predicated region
    $region18: #{tpu_custom_call.1} parent=1 // pred_check
      _
    $region19: #{tpu_custom_call.1} parent=1 // pred_check_branch
      %43 = sbr.rel (0) target = $region21
    $region20: #{tpu_custom_call.1} parent=1 // pred_region
      _
    $region21: #{tpu_custom_call.1} parent=1 // pred_fallthru
      _
    // Predicated region
    $region22: #{tpu_custom_call.1} parent=1 // pred_check
      _
    $region23: #{tpu_custom_call.1} parent=1 // pred_check_branch
      %45 = sbr.rel (0) target = $region25
    $region24: #{tpu_custom_call.1} parent=1 // pred_region
      %47 = vsyncadd [#allocation6], 0
      %s48 = sshll.u32 %s5, 4
      %s49 = int_to_ptr.hbm [resolvable:$true] %s48
      %s50 = sshll.u32 [#allocation7], 4
      %s51 = int_to_ptr.vmem [resolvable:$true] %s50
      %56 = dma.hbm_to_vmem [thread:$0]  %s49, 2048, %s51, [#allocation6], 128, 128, 8
    $region25: #{tpu_custom_call.1} parent=1 // pred_fallthru
      _
    // Predicated region
    $region26: #{tpu_custom_call.1} parent=1 // pred_check
      _
    $region27: #{tpu_custom_call.1} parent=1 // pred_check_branch
      %58 = sbr.rel (0) target = $region29
    $region28: #{tpu_custom_call.1} parent=1 // pred_region
      %60 = dma.done [#allocation3], 32
    $region29: #{tpu_custom_call.1} parent=1 // pred_fallthru
      _
    // Predicated region
    $region30: #{tpu_custom_call.1} parent=1 // pred_check
      _
    $region31: #{tpu_custom_call.1} parent=1 // pred_check_branch
      %62 = sbr.rel (0) target = $region33
    $region32: #{tpu_custom_call.1} parent=1 // pred_region
      %64 = dma.done [#allocation6], 4096
    $region33: #{tpu_custom_call.1} parent=1 // pred_fallthru
      _
    // Predicated region
    $region34: #{tpu_custom_call.1} parent=1 // pred_check
      _
    $region35: #{tpu_custom_call.1} parent=1 // pred_check_branch
      %66 = sbr.rel (0) target = $region37
    $region36: #{tpu_custom_call.1} parent=1 // pred_region
      %68 = dma.done [#allocation6], 2048
    $region37: #{tpu_custom_call.1} parent=1 // pred_fallthru
      _
    %v69 = vld [vmem:[%s0] sm:$0xff]
    %v70 = vld [vmem:[%s2] ss:$4 sm:$0x3]
    %s71 = scalar_lea.vmem %s2, 1
    %v72 = vld [vmem:[%s71] ss:$4 sm:$0x3]
    %s73 = scalar_lea.vmem %s2, 2
    %v74 = vld [vmem:[%s73] ss:$4 sm:$0x3]
    %v75 = vld [vmem:[%s4] sm:$0x1]
    %v76 = vld [vmem:[%s4 + $0x1] sm:$0x1]
    %v77 = vld [vmem:[%s4 + $0x2] sm:$0x1]
    %v78 = vld [vmem:[%s4 + $0x3] sm:$0x1]
    %v79 = vld [vmem:[#allocation2] sm:$0x3]
    %81 = vset.pattern.permute.xlu0 0
    %82 = vperm.xlu0 %81, %v69
    %v83 = vpop.permute.xlu0 %82
    %v86 = vperm.slane %v79, 0
    %v87 = vperm.slane %v79, 1
    %v90 = vmul.f32 %v83, %v86
    %v91 = vmul.f32 %v83, %v87
    %v93 = vperm.slane %v70, 0
    %v94 = vperm.slane %v70, 1
    %v97 = vadd.f32 %v90, %v93
    %v98 = vadd.f32 %v91, %v94
    %v99 = vrot.slane %v97, 4
    %v100 = vadd.f32 %v97, %v99
    %v101 = vrot.slane %v100, 2
    %v102 = vadd.f32 %v100, %v101
    %v103 = vrot.slane %v102, 1
    %v104 = vadd.f32 %v102, %v103
    %v105 = vrot.slane %v98, 4
    %v106 = vadd.f32 %v98, %v105
    %v107 = vrot.slane %v106, 2
    %v108 = vadd.f32 %v106, %v107
    %v109 = vrot.slane %v108, 1
    %v110 = vadd.f32 %v108, %v109
    %v111 = vmul.f32 %v97, %v97
    %v112 = vmul.f32 %v98, %v98
    %v113 = vrot.slane %v111, 4
    %v114 = vadd.f32 %v111, %v113
    %v115 = vrot.slane %v114, 2
    %v116 = vadd.f32 %v114, %v115
    %v117 = vrot.slane %v116, 1
    %v118 = vadd.f32 %v116, %v117
    %v119 = vrot.slane %v112, 4
    %v120 = vadd.f32 %v112, %v119
    %v121 = vrot.slane %v120, 2
    %v122 = vadd.f32 %v120, %v121
    %v123 = vrot.slane %v122, 1
    %v124 = vadd.f32 %v122, %v123
    %v125 = vmul.f32 %v104, 0.125
    %v126 = vmul.f32 %v110, 0.125
    %v127 = vmul.f32 %v118, 0.125
    %v128 = vmul.f32 %v124, 0.125
    %v129 = vmul.f32 %v125, %v125
    %v130 = vmul.f32 %v126, %v126
    %v131 = vsub.f32 %v127, %v129
    %v132 = vsub.f32 %v128, %v130
    %v133 = vadd.f32 %v131, 1e-05
    %v134 = vadd.f32 %v132, 1e-05
    %v135 = vrsqrt.pop %v133
    %v136 = vmul.f32 %v135, %v133
    %v137 = vmul.f32 %v136, %v135
    %v138 = vmul.f32 0.5, %v137
    %v139 = vsub.f32 1.5, %v138
    %v140 = vmul.f32 %v135, %v139
    %vm141 = vweird.f32 %v133
    %vm142 = vweird.f32 %v135
    %vm143 = vmor %vm141, %vm142
    %v144 = vsel %vm143, %v135, %v140
    %v145 = vrsqrt.pop %v134
    %v146 = vmul.f32 %v145, %v134
    %v147 = vmul.f32 %v146, %v145
    %v148 = vmul.f32 0.5, %v147
    %v149 = vsub.f32 1.5, %v148
    %v150 = vmul.f32 %v145, %v149
    %vm151 = vweird.f32 %v134
    %vm152 = vweird.f32 %v145
    %vm153 = vmor %vm151, %vm152
    %v154 = vsel %vm153, %v145, %v150
    %v157 = vrot.slane %v154, 7
    %vm158 = vcmask 1040384
    %v159 = vsel %vm158, %v144, %v157
    %v161 = vmul.f32 %v72, %v159
    %v163 = vperm.slane %v161, 0
    %v164 = vperm.slane %v161, 1
    %v167 = vmul.f32 %v125, %v163
    %v168 = vmul.f32 %v126, %v164
    %v171 = vrot.slane %v168, 7
    %v172 = vsel %vm158, %v167, %v171
    %v174 = vsub.f32 %v74, %v172
    %v175 = vmul.f32 %v97, %v163
    %v176 = vmul.f32 %v98, %v164
    %v178 = vperm.slane %v174, 0
    %v179 = vperm.slane %v174, 1
    %v182 = vadd.f32 %v175, %v178
    %v183 = vadd.f32 %v176, %v179
    %v184 = vmax.f32 %v182, 0.0
    %v185 = vmax.f32 %v183, 0.0
    %v186 = vld [vmem:[#allocation5] sm:$0xff]
    %v187 = vld [vmem:[#allocation5 + $0x8] sm:$0xff]
    %v188 = vld [vmem:[#allocation5 + $0x10] sm:$0xff]
    %v189 = vld [vmem:[#allocation5 + $0x18] sm:$0xff]
    %v190 = vld [vmem:[#allocation5 + $0x20] sm:$0xff]
    %v191 = vld [vmem:[#allocation5 + $0x28] sm:$0xff]
    %v192 = vld [vmem:[#allocation5 + $0x30] sm:$0xff]
    %v193 = vld [vmem:[#allocation5 + $0x38] sm:$0xff]
    %v194 = vld [vmem:[#allocation5 + $0x40] sm:$0xff]
    %v195 = vld [vmem:[#allocation5 + $0x48] sm:$0xff]
    %v196 = vld [vmem:[#allocation5 + $0x50] sm:$0xff]
    %v197 = vld [vmem:[#allocation5 + $0x58] sm:$0xff]
    %v198 = vld [vmem:[#allocation5 + $0x60] sm:$0xff]
    %v199 = vld [vmem:[#allocation5 + $0x68] sm:$0xff]
    %v200 = vld [vmem:[#allocation5 + $0x70] sm:$0xff]
    %v201 = vld [vmem:[#allocation5 + $0x78] sm:$0xff]
    %v202 = vld [vmem:[#allocation5 + $0x80] sm:$0xff]
    %v203 = vld [vmem:[#allocation5 + $0x88] sm:$0xff]
    %v204 = vld [vmem:[#allocation5 + $0x90] sm:$0xff]
    %v205 = vld [vmem:[#allocation5 + $0x98] sm:$0xff]
    %v206 = vld [vmem:[#allocation5 + $0xa0] sm:$0xff]
    %v207 = vld [vmem:[#allocation5 + $0xa8] sm:$0xff]
    %v208 = vld [vmem:[#allocation5 + $0xb0] sm:$0xff]
    %v209 = vld [vmem:[#allocation5 + $0xb8] sm:$0xff]
    %v210 = vld [vmem:[#allocation5 + $0xc0] sm:$0xff]
    %v211 = vld [vmem:[#allocation5 + $0xc8] sm:$0xff]
    %v212 = vld [vmem:[#allocation5 + $0xd0] sm:$0xff]
    %v213 = vld [vmem:[#allocation5 + $0xd8] sm:$0xff]
    %v214 = vld [vmem:[#allocation5 + $0xe0] sm:$0xff]
    %v215 = vld [vmem:[#allocation5 + $0xe8] sm:$0xff]
    %v216 = vld [vmem:[#allocation5 + $0xf0] sm:$0xff]
    %v217 = vld [vmem:[#allocation5 + $0xf8] sm:$0xff]
    %v218 = vperm.slane %v75, 0
    %219 = vmatpush.msra.mxu0 %v201
    %220 = vmatpush.msra.mxu0 %v200
    %221 = vmatpush.msra.mxu0 %v199
    %222 = vmatpush.msra.mxu0 %v198
    %223 = vmatpush.msra.mxu0 %v197
    %224 = vmatpush.msra.mxu0 %v196
    %225 = vmatpush.msra.mxu0 %v195
    %226 = vmatpush.msra.mxu0 %v194
    %227 = vmatpush.msra.mxu0 %v193
    %228 = vmatpush.msra.mxu0 %v192
    %229 = vmatpush.msra.mxu0 %v191
    %230 = vmatpush.msra.mxu0 %v190
    %231 = vmatpush.msra.mxu0 %v189
    %232 = vmatpush.msra.mxu0 %v188
    %233 = vmatpush.msra.mxu0 %v187
    %234 = vmatpush.msra.mxu0 %v186
    %235 = vmatmul.f32.gmra.mxu0 %v184
    %v236 = vpop.f32.mrf.mxu0
    %v237 = vadd.f32 %v218, %v236
    %238 = vdwg.mxu0
    %239 = vmatpush.msra.mxu0 %v217
    %240 = vmatpush.msra.mxu0 %v216
    %241 = vmatpush.msra.mxu0 %v215
    %242 = vmatpush.msra.mxu0 %v214
    %243 = vmatpush.msra.mxu0 %v213
    %244 = vmatpush.msra.mxu0 %v212
    %245 = vmatpush.msra.mxu0 %v211
    %246 = vmatpush.msra.mxu0 %v210
    %247 = vmatpush.msra.mxu0 %v209
    %248 = vmatpush.msra.mxu0 %v208
    %249 = vmatpush.msra.mxu0 %v207
    %250 = vmatpush.msra.mxu0 %v206
    %251 = vmatpush.msra.mxu0 %v205
    %252 = vmatpush.msra.mxu0 %v204
    %253 = vmatpush.msra.mxu0 %v203
    %254 = vmatpush.msra.mxu0 %v202
    %255 = vmatmul.f32.gmra.mxu0 %v185
    %v256 = vpop.f32.mrf.mxu0
    %v257 = vadd.f32 %v237, %v256
    %258 = vdwg.mxu0
    %v259 = vrot.slane %v257, 4
    %v260 = vadd.f32 %v257, %v259
    %v261 = vrot.slane %v260, 2
    %v262 = vadd.f32 %v260, %v261
    %v263 = vrot.slane %v262, 1
    %v264 = vadd.f32 %v262, %v263
    %v265 = vmul.f32 %v257, %v257
    %v266 = vrot.slane %v265, 4
    %v267 = vadd.f32 %v265, %v266
    %v268 = vrot.slane %v267, 2
    %v269 = vadd.f32 %v267, %v268
    %v270 = vrot.slane %v269, 1
    %v271 = vadd.f32 %v269, %v270
    %v272 = vmul.f32 %v264, 0.125
    %v273 = vmul.f32 %v271, 0.125
    %v274 = vmul.f32 %v272, %v272
    %v275 = vsub.f32 %v273, %v274
    %v276 = vadd.f32 %v275, 1e-05
    %v277 = vrsqrt.pop %v276
    %v278 = vmul.f32 %v277, %v276
    %v279 = vmul.f32 %v278, %v277
    %v280 = vmul.f32 0.5, %v279
    %v281 = vsub.f32 1.5, %v280
    %v282 = vmul.f32 %v277, %v281
    %vm283 = vweird.f32 %v276
    %vm284 = vweird.f32 %v277
    %vm285 = vmor %vm283, %vm284
    %v286 = vsel %vm285, %v277, %v282
    %v287 = vmul.f32 %v76, %v286
    %v288 = vmul.f32 %v272, %v287
    %v289 = vsub.f32 %v77, %v288
    %v290 = vperm.slane %v287, 0
    %v291 = vmul.f32 %v257, %v290
    %v292 = vperm.slane %v289, 0
    %v293 = vadd.f32 %v291, %v292
    %v294 = vmax.f32 %v293, 0.0
    %v295 = vld [vmem:[#allocation7] sm:$0xff]
    %v296 = vld [vmem:[#allocation7 + $0x8] sm:$0xff]
    %v297 = vld [vmem:[#allocation7 + $0x10] sm:$0xff]
    %v298 = vld [vmem:[#allocation7 + $0x18] sm:$0xff]
    %v299 = vld [vmem:[#allocation7 + $0x20] sm:$0xff]
    %v300 = vld [vmem:[#allocation7 + $0x28] sm:$0xff]
    %v301 = vld [vmem:[#allocation7 + $0x30] sm:$0xff]
    %v302 = vld [vmem:[#allocation7 + $0x38] sm:$0xff]
    %v303 = vld [vmem:[#allocation7 + $0x40] sm:$0xff]
    %v304 = vld [vmem:[#allocation7 + $0x48] sm:$0xff]
    %v305 = vld [vmem:[#allocation7 + $0x50] sm:$0xff]
    %v306 = vld [vmem:[#allocation7 + $0x58] sm:$0xff]
    %v307 = vld [vmem:[#allocation7 + $0x60] sm:$0xff]
    %v308 = vld [vmem:[#allocation7 + $0x68] sm:$0xff]
    %v309 = vld [vmem:[#allocation7 + $0x70] sm:$0xff]
    %v310 = vld [vmem:[#allocation7 + $0x78] sm:$0xff]
    %v311 = vperm.slane %v78, 0
    %312 = vmatpush.msra.mxu0 %v310
    %313 = vmatpush.msra.mxu0 %v309
    %314 = vmatpush.msra.mxu0 %v308
    %315 = vmatpush.msra.mxu0 %v307
    %316 = vmatpush.msra.mxu0 %v306
    %317 = vmatpush.msra.mxu0 %v305
    %318 = vmatpush.msra.mxu0 %v304
    %319 = vmatpush.msra.mxu0 %v303
    %320 = vmatpush.msra.mxu0 %v302
    %321 = vmatpush.msra.mxu0 %v301
    %322 = vmatpush.msra.mxu0 %v300
    %323 = vmatpush.msra.mxu0 %v299
    %324 = vmatpush.msra.mxu0 %v298
    %325 = vmatpush.msra.mxu0 %v297
    %326 = vmatpush.msra.mxu0 %v296
    %327 = vmatpush.msra.mxu0 %v295
    %328 = vmatmul.f32.gmra.mxu0 %v294
    %v329 = vpop.f32.mrf.mxu0
    %v330 = vadd.f32 %v311, %v329
    %331 = vdwg.mxu0
    %332 = vst [vmem:[#allocation8] sm:$0xff] %v330
    // Predicated region
    $region38: #{tpu_custom_call.1} parent=1 // pred_check
      _
    $region39: #{tpu_custom_call.1} parent=1 // pred_check_branch
      %334 = sbr.rel (0) target = $region41
    $region40: #{tpu_custom_call.1} parent=1 // pred_region
      %336 = vsyncadd [#allocation4], 0
      %s338 = sshll.u32 [#allocation8], 4
      %s339 = int_to_ptr.vmem [resolvable:$true] %s338
      %s340 = sshll.u32 %s6, 4
      %s341 = int_to_ptr.hbm [resolvable:$true] %s340
      %343 = dma.vmem_to_hbm [thread:$0]  %s339, 128, %s341, [#allocation4]
    $region41: #{tpu_custom_call.1} parent=1 // pred_fallthru
      _
    // Predicated region
    $region42: #{tpu_custom_call.1} parent=1 // pred_check
      _
    $region43: #{tpu_custom_call.1} parent=1 // pred_check_branch
      %345 = sbr.rel (0) target = $region45
    $region44: #{tpu_custom_call.1} parent=1 // pred_region
      %347 = dma.done [#allocation4], 128
    $region45: #{tpu_custom_call.1} parent=1 // pred_fallthru
      _
    %348 = vsyncpa [#allocation3], 1
    %349 = vsyncpa [#allocation6], 1
    %350 = vsyncpa [#allocation4], 1

</llo_original>
